<compile_context>
chip_gen: v5e
topology: v5e:2x2
jax: 0.10.0
libtpu: 0.0.40
codegen_flags: <defaults>
</compile_context>

<pallas_src>
import jax
import jax.numpy as jnp
from jax.experimental import pallas as pl
from jax.experimental.pallas import tpu as pltpu


def _matcomp_kernel(w_ref, e_ref, o_ref, acc_ref):
    # w_ref: (tm, tk)  weight tile
    # e_ref: (tk, tn)  pre-transposed embedding tile (canonical MXU RHS)
    # o_ref: (tm, tn)  output tile (written once, at the last K step)
    # acc_ref: (tm, tn) f32 accumulator, resident across the K grid axis
    @pl.when(pl.program_id(2) == 0)
    def _init():
        acc_ref[...] = jnp.zeros_like(acc_ref)

    acc_ref[...] += jnp.dot(
        w_ref[...], e_ref[...], preferred_element_type=jnp.float32
    )

    @pl.when(pl.program_id(2) == pl.num_programs(2) - 1)
    def _store():
        o_ref[...] = acc_ref[...].astype(o_ref.dtype)


def _cdiv(a, b):
    return -(-a // b)


def _round_up(x, m):
    return _cdiv(x, m) * m


def _vmem_budget_bytes():
    # Budget against the real chip when we can see it; otherwise assume the
    # tightest generation (v7x: 64 MiB per TensorCore). Cap at 48 MiB so the
    # same config is legal on every generation (v5e/v6e physical = 128 MiB).
    phys = 64 * (1 << 20)
    try:
        phys = pltpu.get_tpu_info().vmem_capacity_bytes
    except Exception:
        pass
    return int(min(phys * 3 // 4, 48 * (1 << 20)))


def _footprint_bytes(tm, tn, tk, in_itemsize, out_itemsize):
    # Double-buffered input + output blocks, plus the f32 accumulator scratch.
    return (2 * (tm * tk + tk * tn) * in_itemsize
            + 2 * tm * tn * out_itemsize
            + tm * tn * 4)


def matrix_completion_forward(weight, embedding, *, out_dtype=jnp.float32,
                              compute_dtype=None, force_pallas=False):
    """out[M, N] = weight[M, K] @ embedding[N, K].T

    This op is output-writeback bound (arithmetic intensity ~= rank/2 FLOPs/B),
    so `out_dtype=jnp.bfloat16` is the single biggest lever when downstream
    tolerates it (halves the dominant HBM stream and doubles usable tn).
    `compute_dtype=jnp.bfloat16` additionally halves input DMA and cuts MXU
    passes on v6e/v7x at ~1e-3 relative error. Defaults match torch (f32).
    """
    M, K = weight.shape
    N, K2 = embedding.shape
    assert K == K2, "weight rank and embedding rank must match"

    # One-time tiny (N x K) transpose in the wrapper -> no per-step XLU
    # transpose; the RHS tile is lane-dense on N.
    emb_t = embedding.T  # (K, N)
    if compute_dtype is not None:
        weight = weight.astype(compute_dtype)
        emb_t = emb_t.astype(compute_dtype)

    # Small-shape fast path: a Pallas launch + DMA fixed cost dwarfs the work;
    # XLA's single matmul is already optimal there.
    if not force_pallas and M * N <= 512 * 512:
        return jnp.dot(
            weight, emb_t, preferred_element_type=jnp.float32
        ).astype(out_dtype)

    in_itemsize = jnp.dtype(weight.dtype).itemsize
    out_itemsize = jnp.dtype(out_dtype).itemsize
    budget = _vmem_budget_bytes()

    # --- K handling: small K stays one full-K block (always a legal block
    # shape); large K streams over an "arbitrary" grid axis with the f32
    # accumulator. K is zero-padded so no garbage ever enters the contraction.
    MAX_TK = 1024
    if K <= MAX_TK:
        tk, Kp = K, K
    else:
        tk = 512
        Kp = _round_up(K, tk)
    if Kp != K:
        weight = jnp.pad(weight, ((0, 0), (0, Kp - K)))
        emb_t = jnp.pad(emb_t, ((0, Kp - K), (0, 0)))

    # --- M/N tiles: fixed (8,128)-aligned candidates, cdiv grid; Pallas masks
    # ragged edge blocks (reads of the padded region only affect discarded
    # output rows/cols since K is exact). Pick the largest pair within budget.
    tn_cands = [c for c in (4096, 2048, 1024, 512, 256, 128) if c <= N] or [N]
    tm_cands = [c for c in (1024, 512, 256, 128, 64, 32, 16, 8) if c <= M] or [M]
    tm, tn = tm_cands[-1], tn_cands[-1]
    for cm, cn in sorted(((a, b) for a in tm_cands for b in tn_cands),
                         key=lambda p: (p[0] * p[1], p[1]), reverse=True):
        if _footprint_bytes(cm, cn, tk, in_itemsize, out_itemsize) <= budget:
            tm, tn = cm, cn
            break

    # v7x has 2 TensorCores per chip: keep >= 2 blocks on a parallel axis for
    # mid/large problems so both cores get work (no-op on v5e/v6e).
    if (_cdiv(M, tm) == 1 and _cdiv(N, tn) == 1
            and M * N >= (1 << 18) and tn > 128):
        tn = max(128, _round_up(_cdiv(N, 2), 128))

    grid = (_cdiv(M, tm), _cdiv(N, tn), Kp // tk)
    gm, gn = grid[0], grid[1]

    cost = pl.CostEstimate(
        flops=2 * M * N * Kp,
        transcendentals=0,
        # Re-streamed input traffic + one output writeback.
        bytes_accessed=(gn * M * Kp + gm * Kp * N) * in_itemsize
                       + M * N * out_itemsize,
    )

    return pl.pallas_call(
        _matcomp_kernel,
        out_shape=jax.ShapeDtypeStruct((M, N), out_dtype),
        grid_spec=pltpu.PrefetchScalarGridSpec(
            num_scalar_prefetch=0,
            grid=grid,
            in_specs=[
                pl.BlockSpec((tm, tk), lambda i, j, k: (i, k)),  # weight tile
                pl.BlockSpec((tk, tn), lambda i, j, k: (k, j)),  # embedding.T tile
            ],
            out_specs=pl.BlockSpec((tm, tn), lambda i, j, k: (i, j)),
            scratch_shapes=[pltpu.VMEM((tm, tn), jnp.float32)],
        ),
        compiler_params=pltpu.CompilerParams(
            dimension_semantics=("parallel", "parallel", "arbitrary"),
            vmem_limit_bytes=budget,
        ),
        cost_estimate=cost,
    )(weight, emb_t)


if __name__ == "__main__":
    key = jax.random.PRNGKey(0)

    # 1) Mirror MatrixCompletionModel(input_shape=(64, 128), rank=16); force
    #    the Pallas path so the kernel itself is exercised (the production
    #    default would take the small-shape XLA fast path here).
    input_shape, rank = (64, 128), 16
    k_emb, k_w, k2, k3 = jax.random.split(key, 4)
    embedding = jax.random.normal(k_emb, (input_shape[-1], rank), jnp.float32)
    weight = jax.random.normal(k_w, input_shape[:-1] + (rank,), jnp.float32)

    out = jax.block_until_ready(
        matrix_completion_forward(weight, embedding, force_pallas=True))
    ref = weight @ embedding.T
    assert out.shape == tuple(input_shape)
    assert jnp.allclose(out, ref, atol=1e-4, rtol=1e-4)

    # 2) Ragged shapes (nothing divides the tiles): exercises the cdiv grid /
    #    masked edge blocks.
    w2 = jax.random.normal(k2, (70, 24), jnp.float32)
    e2 = jax.random.normal(k3, (200, 24), jnp.float32)
    out2 = jax.block_until_ready(
        matrix_completion_forward(w2, e2, force_pallas=True))
    assert jnp.allclose(out2, w2 @ e2.T, atol=1e-4, rtol=1e-4)

    # 3) Large rank: exercises the K grid axis + accumulator + zero-padding.
    kw3, ke3 = jax.random.split(k3)
    w3 = jax.random.normal(kw3, (16, 1100), jnp.float32)
    e3 = jax.random.normal(ke3, (256, 1100), jnp.float32)
    out3 = jax.block_until_ready(
        matrix_completion_forward(w3, e3, force_pallas=True))
    assert jnp.allclose(out3, w3 @ e3.T, atol=1e-3, rtol=1e-3)

    # 4) bf16 output path (the main perf lever) — loose tolerance vs f32 ref.
    out_bf16 = jax.block_until_ready(
        matrix_completion_forward(weight, embedding, out_dtype=jnp.bfloat16,
                                  force_pallas=True))
    assert jnp.allclose(out_bf16.astype(jnp.float32), ref, atol=0.1, rtol=0.1)

    print("KERNEL_OK")
</pallas_src>

<mosaic_0001>
module attributes {stable_mosaic.version = 11 : i64} {
  func.func @_matcomp_kernel(%arg0: i32, %arg1: i32, %arg2: i32, %arg3: memref<64x16xf32, #tpu.memory_space<vmem>>, %arg4: memref<16x128xf32, #tpu.memory_space<vmem>>, %arg5: memref<64x128xf32, #tpu.memory_space<vmem>>, %arg6: memref<64x128xf32, #tpu.memory_space<vmem>>) attributes {dimension_semantics = [#tpu.dimension_semantics<parallel>, #tpu.dimension_semantics<parallel>, #tpu.dimension_semantics<arbitrary>], iteration_bounds = array<i64: 1, 1, 1>, scalar_prefetch = 0 : i64, scratch_operands = 1 : i64, tpu.core_type = #tpu.core_type<tc>, window_params = [{transform_indices = @transform_0, window_bounds = array<i64: 64, 16>}, {transform_indices = @transform_1, window_bounds = array<i64: 16, 128>}, {transform_indices = @transform_2, window_bounds = array<i64: 64, 128>}]} {
    %c0_i32 = arith.constant 0 : i32
    %0 = arith.cmpi eq, %arg2, %c0_i32 : i32
    %1 = arith.extui %0 : i1 to i32
    %c0_i32_0 = arith.constant 0 : i32
    %2 = arith.cmpi ne, %1, %c0_i32_0 : i32
    scf.if %2 {
      %cst_10 = arith.constant 0.000000e+00 : f32
      %12 = vector.broadcast %cst_10 : f32 to vector<64x128xf32>
      %c0_11 = arith.constant 0 : index
      %c0_12 = arith.constant 0 : index
      %13 = vector.load %arg6[%c0_11, %c0_12] : memref<64x128xf32, #tpu.memory_space<vmem>>, vector<64x128xf32>
      tpu.vector_store %arg6[%c0_11, %c0_12], %12 {strides = array<i32>} : memref<64x128xf32, #tpu.memory_space<vmem>>, vector<64x128xf32>,
    } else {
    }
    %c0 = arith.constant 0 : index
    %c0_1 = arith.constant 0 : index
    %3 = vector.load %arg6[%c0, %c0_1] : memref<64x128xf32, #tpu.memory_space<vmem>>, vector<64x128xf32>
    %c0_2 = arith.constant 0 : index
    %c0_3 = arith.constant 0 : index
    %4 = vector.load %arg3[%c0_2, %c0_3] : memref<64x16xf32, #tpu.memory_space<vmem>>, vector<64x16xf32>
    %c0_4 = arith.constant 0 : index
    %c0_5 = arith.constant 0 : index
    %5 = vector.load %arg4[%c0_4, %c0_5] : memref<16x128xf32, #tpu.memory_space<vmem>>, vector<16x128xf32>
    %cst = arith.constant dense<0.000000e+00> : vector<64x128xf32>
    %6 = tpu.matmul %4, %5, %cst {dimension_numbers = #tpu.dot_dimension_numbers<[1], [0], [0], [1], [0, 0, 1, 1], [], []>} : vector<64x16xf32>, vector<16x128xf32>, vector<64x128xf32> -> vector<64x128xf32>
    %7 = arith.addf %3, %6 : vector<64x128xf32>
    %c0_6 = arith.constant 0 : index
    %c0_7 = arith.constant 0 : index
    %8 = vector.load %arg6[%c0_6, %c0_7] : memref<64x128xf32, #tpu.memory_space<vmem>>, vector<64x128xf32>
    tpu.vector_store %arg6[%c0_6, %c0_7], %7 {strides = array<i32>} : memref<64x128xf32, #tpu.memory_space<vmem>>, vector<64x128xf32>,
    %c0_i32_8 = arith.constant 0 : i32
    %9 = arith.cmpi eq, %arg2, %c0_i32_8 : i32
    %10 = arith.extui %9 : i1 to i32
    %c0_i32_9 = arith.constant 0 : i32
    %11 = arith.cmpi ne, %10, %c0_i32_9 : i32
    scf.if %11 {
      %c0_10 = arith.constant 0 : index
      %c0_11 = arith.constant 0 : index
      %12 = vector.load %arg6[%c0_10, %c0_11] : memref<64x128xf32, #tpu.memory_space<vmem>>, vector<64x128xf32>
      %c0_12 = arith.constant 0 : index
      %c0_13 = arith.constant 0 : index
      %13 = vector.load %arg5[%c0_12, %c0_13] : memref<64x128xf32, #tpu.memory_space<vmem>>, vector<64x128xf32>
      tpu.vector_store %arg5[%c0_12, %c0_13], %12 {strides = array<i32>} : memref<64x128xf32, #tpu.memory_space<vmem>>, vector<64x128xf32>,
    } else {
    }
    return
  }
  func.func @transform_0(%arg0: i32, %arg1: i32, %arg2: i32) -> (i32, i32) {
    %c0_i32 = arith.constant 0 : i32
    return %arg0, %arg2 : i32, i32
  }
  func.func @transform_1(%arg0: i32, %arg1: i32, %arg2: i32) -> (i32, i32) {
    %c0_i32 = arith.constant 0 : i32
    return %arg2, %arg1 : i32, i32
  }
  func.func @transform_2(%arg0: i32, %arg1: i32, %arg2: i32) -> (i32, i32) {
    %c0_i32 = arith.constant 0 : i32
    return %arg0, %arg1 : i32, i32
  }
}

</mosaic_0001>

<llo_original>
// kernel: tpu_custom_call.1
$region0: #{tpu_custom_call.1}
  #allocation0 [shape = 'u32[]', space=smem, size = 0x4, offset = 0x4, fixed_abs, tag = 'smem constant byte address 0x4 - core index']
  #allocation1 [shape = 'u32[72,128]{1,0:T(1,128)}', space=vmem, size = 0x9000, scoped, tag = 'internal scratch']
  #allocation2 [shape = 'f32[64,128]{1,0:T(8,128)}', space=vmem, size = 0x8000, scoped, tag = 'scratch operand']
  %s0 = inlined_call_operand.vmem [shape: f32[64,16], index: 0, kind: input, shape index: {}]
  %s1 = inlined_call_operand.vmem [shape: f32[16,128], index: 1, kind: input, shape index: {}]
  %s2 = inlined_call_operand.hbm [shape: f32[64,128], index: 2, kind: output, shape index: {}]
  %s3 = sld [smem:[#allocation0]]
  $region26: #{tpu_custom_call.1} parent=0
    _
  %s5 = ssub.s32 1, %s3
  %s6 = scalar_select 0, %s5, %s3
  $region1: #{tpu_custom_call.1} parent=0
    #allocation3 [shape = 'u8[32768]{0}', space=vmem, size = 0x8000, scoped, tag = 'output window, operand 0, single buffered']
    #allocation4 [shape = 's32[1]{0}', space=sflag, size = 0x4, scoped, tag = 'scoped memory for tpu_custom_call.1']
    %7 = vsyncpa [#allocation4], 0
    // Predicated region
    $region2: #{tpu_custom_call.1} parent=1 // pred_check
      _
    $region3: #{tpu_custom_call.1} parent=1 // pred_check_branch
      %9 = sbr.rel (0) target = $region5
    $region4: #{tpu_custom_call.1} parent=1 // pred_region
      _
    $region5: #{tpu_custom_call.1} parent=1 // pred_fallthru
      _
    // Predicated region
    $region6: #{tpu_custom_call.1} parent=1 // pred_check
      _
    $region7: #{tpu_custom_call.1} parent=1 // pred_check_branch
      %11 = sbr.rel (0) target = $region9
    $region8: #{tpu_custom_call.1} parent=1 // pred_region
      _
    $region9: #{tpu_custom_call.1} parent=1 // pred_fallthru
      _
    %p12 = scmp.eq.s32.totalorder 0, 0
    // Predicated region
    $region10: #{tpu_custom_call.1} parent=1 // pred_check
      %p13 = pneg %p12
    $region11: #{tpu_custom_call.1} parent=1 // pred_check_branch
      %15 = sbr.rel (%p13) target = $region13
    $region12: #{tpu_custom_call.1} parent=1 // pred_region
      %16 = vst [vmem:[#allocation2] sm:$0xff] 0.0
      %17 = vst [vmem:[#allocation2 + $0x8] sm:$0xff] 0.0
      %18 = vst [vmem:[#allocation2 + $0x10] sm:$0xff] 0.0
      %19 = vst [vmem:[#allocation2 + $0x18] sm:$0xff] 0.0
      %20 = vst [vmem:[#allocation2 + $0x20] sm:$0xff] 0.0
      %21 = vst [vmem:[#allocation2 + $0x28] sm:$0xff] 0.0
      %22 = vst [vmem:[#allocation2 + $0x30] sm:$0xff] 0.0
      %23 = vst [vmem:[#allocation2 + $0x38] sm:$0xff] 0.0
    $region13: #{tpu_custom_call.1} parent=1 // pred_fallthru
      _
    %v24 = vld [vmem:[#allocation2] sm:$0xff]
    %v25 = vld [vmem:[#allocation2 + $0x8] sm:$0xff]
    %v26 = vld [vmem:[#allocation2 + $0x10] sm:$0xff]
    %v27 = vld [vmem:[#allocation2 + $0x18] sm:$0xff]
    %v28 = vld [vmem:[#allocation2 + $0x20] sm:$0xff]
    %v29 = vld [vmem:[#allocation2 + $0x28] sm:$0xff]
    %v30 = vld [vmem:[#allocation2 + $0x30] sm:$0xff]
    %v31 = vld [vmem:[#allocation2 + $0x38] sm:$0xff]
    %v32 = vld [vmem:[%s0] sm:$0xff]
    %v33 = vld [vmem:[%s0 + $0x8] sm:$0xff]
    %v34 = vld [vmem:[%s0 + $0x10] sm:$0xff]
    %v35 = vld [vmem:[%s0 + $0x18] sm:$0xff]
    %v36 = vld [vmem:[%s0 + $0x20] sm:$0xff]
    %v37 = vld [vmem:[%s0 + $0x28] sm:$0xff]
    %v38 = vld [vmem:[%s0 + $0x30] sm:$0xff]
    %v39 = vld [vmem:[%s0 + $0x38] sm:$0xff]
    %v40 = vld [vmem:[%s1] sm:$0xff]
    %v41 = vld [vmem:[%s1 + $0x8] sm:$0xff]
    %vm42 = vcmask 130048
    %v44 = vsel %vm42, %v32, 0
    %v47 = vsel %vm42, %v33, 0
    %v50 = vsel %vm42, %v34, 0
    %v53 = vsel %vm42, %v35, 0
    %v56 = vsel %vm42, %v36, 0
    %v59 = vsel %vm42, %v37, 0
    %v62 = vsel %vm42, %v38, 0
    %v65 = vsel %vm42, %v39, 0
    %67 = vmatpush.msra.mxu0 0.0
    %68 = vmatpush.msra.mxu0 0.0
    %69 = vmatpush.msra.mxu0 0.0
    %70 = vmatpush.msra.mxu0 0.0
    %71 = vmatpush.msra.mxu0 0.0
    %72 = vmatpush.msra.mxu0 0.0
    %73 = vmatpush.msra.mxu0 0.0
    %74 = vmatpush.msra.mxu0 0.0
    %75 = vmatpush.msra.mxu0 0.0
    %76 = vmatpush.msra.mxu0 0.0
    %77 = vmatpush.msra.mxu0 0.0
    %78 = vmatpush.msra.mxu0 0.0
    %79 = vmatpush.msra.mxu0 0.0
    %80 = vmatpush.msra.mxu0 0.0
    %81 = vmatpush.msra.mxu0 %v41
    %82 = vmatpush.msra.mxu0 %v40
    %83 = vmatmul.f32.gmra.mxu0 %v44
    %v84 = vpop.f32.mrf.mxu0
    %v85 = vadd.f32 0.0, %v84
    %86 = vmatmul.f32.gmra.mxu0 %v47
    %v87 = vpop.f32.mrf.mxu0
    %v88 = vadd.f32 0.0, %v87
    %89 = vmatmul.f32.gmra.mxu0 %v50
    %v90 = vpop.f32.mrf.mxu0
    %v91 = vadd.f32 0.0, %v90
    %92 = vmatmul.f32.gmra.mxu0 %v53
    %v93 = vpop.f32.mrf.mxu0
    %v94 = vadd.f32 0.0, %v93
    %95 = vmatmul.f32.gmra.mxu0 %v56
    %v96 = vpop.f32.mrf.mxu0
    %v97 = vadd.f32 0.0, %v96
    %98 = vmatmul.f32.gmra.mxu0 %v59
    %v99 = vpop.f32.mrf.mxu0
    %v100 = vadd.f32 0.0, %v99
    %101 = vmatmul.f32.gmra.mxu0 %v62
    %v102 = vpop.f32.mrf.mxu0
    %v103 = vadd.f32 0.0, %v102
    %104 = vmatmul.f32.gmra.mxu0 %v65
    %v105 = vpop.f32.mrf.mxu0
    %v106 = vadd.f32 0.0, %v105
    %107 = vdwg.mxu0
    %v108 = vadd.f32 %v24, %v85
    %v109 = vadd.f32 %v25, %v88
    %v110 = vadd.f32 %v26, %v91
    %v111 = vadd.f32 %v27, %v94
    %v112 = vadd.f32 %v28, %v97
    %v113 = vadd.f32 %v29, %v100
    %v114 = vadd.f32 %v30, %v103
    %v115 = vadd.f32 %v31, %v106
    %116 = vst [vmem:[#allocation2] sm:$0xff] %v108
    %117 = vst [vmem:[#allocation2 + $0x8] sm:$0xff] %v109
    %118 = vst [vmem:[#allocation2 + $0x10] sm:$0xff] %v110
    %119 = vst [vmem:[#allocation2 + $0x18] sm:$0xff] %v111
    %120 = vst [vmem:[#allocation2 + $0x20] sm:$0xff] %v112
    %121 = vst [vmem:[#allocation2 + $0x28] sm:$0xff] %v113
    %122 = vst [vmem:[#allocation2 + $0x30] sm:$0xff] %v114
    %123 = vst [vmem:[#allocation2 + $0x38] sm:$0xff] %v115
    // Predicated region
    $region14: #{tpu_custom_call.1} parent=1 // pred_check
      %p124 = pneg %p12
    $region15: #{tpu_custom_call.1} parent=1 // pred_check_branch
      %126 = sbr.rel (%p124) target = $region17
    $region16: #{tpu_custom_call.1} parent=1 // pred_region
      %v127 = vld [vmem:[#allocation2] sm:$0xff]
      %v128 = vld [vmem:[#allocation2 + $0x8] sm:$0xff]
      %v129 = vld [vmem:[#allocation2 + $0x10] sm:$0xff]
      %v130 = vld [vmem:[#allocation2 + $0x18] sm:$0xff]
      %v131 = vld [vmem:[#allocation2 + $0x20] sm:$0xff]
      %v132 = vld [vmem:[#allocation2 + $0x28] sm:$0xff]
      %v133 = vld [vmem:[#allocation2 + $0x30] sm:$0xff]
      %v134 = vld [vmem:[#allocation2 + $0x38] sm:$0xff]
      %135 = vst [vmem:[#allocation3] sm:$0xff] %v127
      %136 = vst [vmem:[#allocation3 + $0x8] sm:$0xff] %v128
      %137 = vst [vmem:[#allocation3 + $0x10] sm:$0xff] %v129
      %138 = vst [vmem:[#allocation3 + $0x18] sm:$0xff] %v130
      %139 = vst [vmem:[#allocation3 + $0x20] sm:$0xff] %v131
      %140 = vst [vmem:[#allocation3 + $0x28] sm:$0xff] %v132
      %141 = vst [vmem:[#allocation3 + $0x30] sm:$0xff] %v133
      %142 = vst [vmem:[#allocation3 + $0x38] sm:$0xff] %v134
    $region17: #{tpu_custom_call.1} parent=1 // pred_fallthru
      _
    // Predicated region
    $region18: #{tpu_custom_call.1} parent=1 // pred_check
      _
    $region19: #{tpu_custom_call.1} parent=1 // pred_check_branch
      %144 = sbr.rel (0) target = $region21
    $region20: #{tpu_custom_call.1} parent=1 // pred_region
      %146 = vsyncadd [#allocation4], 0
      %s147 = sshll.u32 [#allocation3], 4
      %s148 = int_to_ptr.vmem [resolvable:$true] %s147
      %s149 = sshll.u32 %s2, 4
      %s150 = int_to_ptr.hbm [resolvable:$true] %s149
      %155 = dma.vmem_to_hbm [thread:$0]  %s148, 1024, %s150, [#allocation4], 128, 128, 8
    $region21: #{tpu_custom_call.1} parent=1 // pred_fallthru
      _
    // Predicated region
    $region22: #{tpu_custom_call.1} parent=1 // pred_check
      _
    $region23: #{tpu_custom_call.1} parent=1 // pred_check_branch
      %157 = sbr.rel (0) target = $region25
    $region24: #{tpu_custom_call.1} parent=1 // pred_region
      %159 = dma.done [#allocation4], 1024
    $region25: #{tpu_custom_call.1} parent=1 // pred_fallthru
      _
    %160 = vsyncpa [#allocation4], 1

</llo_original>
